<compile_context>
chip_gen: v7x
topology: tpu7x:2x2x1
jax: 0.10.0
libtpu: 0.0.40
codegen_flags: <defaults>
</compile_context>

<pallas_src>
import functools
from collections import namedtuple

import jax
import jax.numpy as jnp
from jax import lax
from jax.experimental import pallas as pl
from jax.experimental.pallas import tpu as pltpu


AttentionResult = namedtuple("AttentionResult", ("scores", "distribution", "vector"))
TokenPrediction = namedtuple(
    "TokenPrediction",
    ("scores", "aligned_tokens", "utterance_attention_results", "decoder_state"),
)


def _round_up(x, m):
    return ((x + m - 1) // m) * m


def _vmem_capacity_bytes():
    try:
        return int(pltpu.get_tpu_info().vmem_capacity_bytes)
    except Exception:
        return 64 << 20  # conservative default (v7x per-core VMEM)


def _pick_tile_v(h_aug, vocab_size, max_tile_v):
    """VMEM-budget-derived vocab tile (lanes): ~1/4 of physical VMEM goes to the
    double-buffered bf16 weight tile + f32 output tile; cap at 8192 lanes."""
    budget = _vmem_capacity_bytes() // 4
    per_col = 2 * (h_aug * 2 + 4)        # 2 buffers x (bf16 weight column + f32 out)
    tile = budget // per_col
    tile = max(128, (tile // 128) * 128)
    tile = min(tile, 8192)               # diminishing returns past ~8k lanes
    if max_tile_v is not None:
        tile = min(tile, max(128, _round_up(max_tile_v, 128)))
    tile = min(tile, _round_up(vocab_size, 128))
    return tile


# -----------------------------------------------------------------------------
# Kernel 1: attention + intermediate state.  Tiny, runs once, all-f32 in VMEM.
# -----------------------------------------------------------------------------
def _attention_kernel(state_ref, keys_ref, wq_ref, wts_ref, wtc_ref,
                      scores_ref, dist_ref, ctx_ref, inter_ref):
    state = state_ref[...]            # (1, H)  f32
    keys = keys_ref[...]              # (L, K)  f32 (values == keys)

    # q = state @ W_query                                       (1, K)
    q = jnp.dot(state, wq_ref[...], preferred_element_type=jnp.float32)

    # attention scores = q @ keys^T (contract on K)              (1, L)
    scores = lax.dot_general(q, keys, (((1,), (1,)), ((), ())),
                             preferred_element_type=jnp.float32)
    scores_ref[...] = scores

    # exact, numerically stable softmax (once-per-call -> no approx reciprocal)
    m = jnp.max(scores, axis=-1, keepdims=True)
    e = jnp.exp(scores - m)
    dist = e / jnp.sum(e, axis=-1, keepdims=True)
    dist_ref[...] = dist

    # context vector = dist @ values                             (1, K)
    ctx = jnp.dot(dist, keys, preferred_element_type=jnp.float32)
    ctx_ref[...] = ctx

    # intermediate = tanh([state ; ctx] @ W_transform)
    #              = tanh(state @ W_ts + ctx @ W_tc)             (1, H)
    inter = jnp.tanh(
        jnp.dot(state, wts_ref[...], preferred_element_type=jnp.float32)
        + jnp.dot(ctx, wtc_ref[...], preferred_element_type=jnp.float32))
    # TODO(synk): dropout on intermediate_state skipped (eval / dropout_amount=0.0).
    inter_ref[...] = inter


# -----------------------------------------------------------------------------
# Kernel 2: streamed vocab projection.  One grid step per V tile; independent
# steps -> "parallel" semantics (v7x megacore shards the tiles across cores).
# -----------------------------------------------------------------------------
def _vocab_kernel(inter_ref, wv_ref, out_ref):
    # inter_ref: (1, H_aug) bf16 -- last meaningful slot carries a 1.0 (folded bias)
    # wv_ref:    (1, H_aug, TILE_V) bf16 tile-major block (contiguous DMA)
    # out_ref:   (1, TILE_V) f32
    out_ref[...] = jnp.dot(inter_ref[...], wv_ref[0],
                           preferred_element_type=jnp.float32)


def prepare_params(params, decoder_state_size, attention_key_size, max_tile_v=None):
    """One-time prep: split W_transform, fold b_vocab into W_vocab, cast the streamed
    weights to bf16, and lay W_vocab out tile-major over lane-dense V tiles."""
    H, K = decoder_state_size, attention_key_size
    wq = jnp.asarray(params["w_query"], jnp.float32)              # (H, K)
    wt = jnp.asarray(params["w_state_transform"], jnp.float32)    # (H + K, H)
    wv = jnp.asarray(params["w_vocab"])                           # (H, V)
    bv = jnp.asarray(params["b_vocab"])                           # (V,)
    V = int(bv.shape[0])

    w_ts = wt[:H, :]                                              # (H, H)
    w_tc = wt[H:, :]                                              # (K, H)

    # Bias folding: row H of the streamed weights carries b_vocab, matched by a
    # 1.0 appended to the intermediate state (removes the separate bias stream).
    H_aug = _round_up(H + 1, 8)

    tile_v = _pick_tile_v(H_aug, V, max_tile_v)
    v_pad = _round_up(V, tile_v)
    num_tiles = v_pad // tile_v

    wv_aug = jnp.zeros((H_aug, v_pad), jnp.bfloat16)
    wv_aug = wv_aug.at[:H, :V].set(wv.astype(jnp.bfloat16))
    wv_aug = wv_aug.at[H, :V].set(bv.astype(jnp.bfloat16))
    # Tile-major layout: each grid step DMAs one fully contiguous H_aug*TILE_V block.
    wv_tiles = wv_aug.reshape(H_aug, num_tiles, tile_v).transpose(1, 0, 2)
    # TODO(synk): optional W_vocab quantization (int8 on v5e/v6e, fp8 on v7x) would
    # halve the dominant HBM stream but needs an accuracy-validation pass first.

    return {
        "w_query": wq, "w_ts": w_ts, "w_tc": w_tc,
        "w_vocab_tiles": wv_tiles,
        "H": H, "K": K, "V": V, "H_AUG": H_aug,
        "V_PAD": v_pad, "TILE_V": tile_v, "NUM_TILES": num_tiles,
    }


def _run_attention(decoder_state, input_hidden_states, kp):
    H, K = kp["H"], kp["K"]
    L = input_hidden_states.shape[0]
    state2d = decoder_state.reshape(1, H).astype(jnp.float32)
    keys = input_hidden_states.astype(jnp.float32)

    out_shapes = (
        jax.ShapeDtypeStruct((1, L), jnp.float32),   # attention scores
        jax.ShapeDtypeStruct((1, L), jnp.float32),   # attention distribution
        jax.ShapeDtypeStruct((1, K), jnp.float32),   # context vector
        jax.ShapeDtypeStruct((1, H), jnp.float32),   # intermediate state
    )
    # Single invocation, full-array blocks resident in VMEM (everything is tiny).
    return pl.pallas_call(_attention_kernel, out_shape=out_shapes)(
        state2d, keys, kp["w_query"], kp["w_ts"], kp["w_tc"])


def _run_vocab_projection(inter_aug, kp):
    H_aug, tile_v = kp["H_AUG"], kp["TILE_V"]
    v_pad, num_tiles = kp["V_PAD"], kp["NUM_TILES"]

    # VMEM: double-buffered bf16 weight tile + f32 out tile + tiny resident inter,
    # plus a few MiB of slack; clamp to the physical capacity.
    tile_bytes = 2 * (H_aug * tile_v * 2 + tile_v * 4)
    vmem_bytes = int(tile_bytes + 4 * H_aug * 2 + (4 << 20))
    vmem_bytes = min(vmem_bytes, _vmem_capacity_bytes())

    grid_spec = pltpu.PrefetchScalarGridSpec(
        num_scalar_prefetch=0,
        grid=(num_tiles,),
        in_specs=[
            pl.BlockSpec((1, H_aug), lambda v: (0, 0)),            # inter (resident)
            pl.BlockSpec((1, H_aug, tile_v), lambda v: (v, 0, 0)),  # W_vocab tile
        ],
        out_specs=pl.BlockSpec((1, tile_v), lambda v: (0, v)),      # vocab tile
    )
    return pl.pallas_call(
        _vocab_kernel,
        out_shape=jax.ShapeDtypeStruct((1, v_pad), jnp.float32),
        grid_spec=grid_spec,
        compiler_params=pltpu.CompilerParams(
            # Tiles are fully independent -> megacore-shardable on v7x.
            dimension_semantics=("parallel",),
            vmem_limit_bytes=vmem_bytes,
        ),
    )(inter_aug, kp["w_vocab_tiles"])


class SimpleAnonymizer:
    """Deterministic stand-in: tokens starting with 'ANON_' are anonymization tokens."""

    def is_anon_tok(self, token):
        return token.startswith("ANON_")


def anonymization_token_predictor_forward(prediction_input, kernel_params, vocabulary,
                                          anonymizer, dropout_amount=0.0):
    decoder_state = prediction_input["decoder_state"]              # (H,)
    input_hidden_states = prediction_input["input_hidden_states"]  # (L, K)
    input_sequence = prediction_input["input_sequence"]            # list[str], length L
    assert input_sequence

    H = kernel_params["H"]
    V = kernel_params["V"]
    H_aug = kernel_params["H_AUG"]

    scores_row, dist_row, ctx_row, inter_row = _run_attention(
        decoder_state, input_hidden_states, kernel_params)

    # Append the folded-bias 1.0 (and zero padding) to the intermediate state.
    inter_aug = jnp.concatenate(
        [inter_row.astype(jnp.bfloat16),
         jnp.ones((1, 1), jnp.bfloat16),
         jnp.zeros((1, H_aug - H - 1), jnp.bfloat16)], axis=-1)

    vocab_row = _run_vocab_projection(inter_aug, kernel_params)

    # Match PyTorch shape conventions.
    attn_scores = scores_row.reshape(-1, 1)          # (L, 1)
    distribution = dist_row.reshape(-1, 1)           # (L, 1)
    context_vector = ctx_row.reshape(-1)             # (K,)   -- squeeze()
    vocab_scores = vocab_row[:, :V].reshape(-1, 1)   # (V, 1) -- drop lane pad, torch.t

    aligned_tokens = list(vocabulary)

    # _score_anonymized_tokens: static selection over the Python token list.
    anon_indices = [i for i, tok in enumerate(input_sequence)
                    if anonymizer.is_anon_tok(tok)]
    final_scores = vocab_scores
    if anon_indices:
        anon_scores = attn_scores[jnp.asarray(anon_indices, dtype=jnp.int32), :]  # (A, 1)
        final_scores = jnp.concatenate([final_scores, anon_scores], axis=0)
        aligned_tokens.extend(input_sequence[i] for i in anon_indices)

    final_scores = jnp.squeeze(final_scores)          # (V + A,)

    attention_results = AttentionResult(attn_scores, distribution, context_vector)
    return TokenPrediction(final_scores, aligned_tokens, attention_results,
                           decoder_state)


def init_params(key, decoder_state_size, attention_key_size, vocab_size):
    kq, kt, kw, kb = jax.random.split(key, 4)
    H, K, V = decoder_state_size, attention_key_size, vocab_size
    scale = 0.1
    return {
        "w_query": scale * jax.random.normal(kq, (H, K), jnp.float32),
        "w_state_transform": scale * jax.random.normal(kt, (H + K, H), jnp.float32),
        "w_vocab": scale * jax.random.normal(kw, (H, V), jnp.float32),
        "b_vocab": scale * jax.random.normal(kb, (V,), jnp.float32),
    }


def _reference_forward(decoder_state, keys, params):
    """Pure-JAX f32 reference of the PyTorch forward math (eval semantics)."""
    q = decoder_state @ params["w_query"]                 # (K,)
    scores = keys @ q                                     # (L,)
    dist = jax.nn.softmax(scores)                         # (L,)
    ctx = dist @ keys                                     # (K,)
    sa = jnp.concatenate([decoder_state, ctx])            # (H + K,)
    inter = jnp.tanh(sa @ params["w_state_transform"])    # (H,)
    vocab = inter @ params["w_vocab"] + params["b_vocab"]  # (V,)
    return scores, dist, ctx, vocab


if __name__ == "__main__":
    H = 32    # decoder_state_size
    K = 32    # attention_key_size
    L = 8     # input sequence length
    V = 300   # vocabulary size (multiple tiles with max_tile_v=128)

    key = jax.random.PRNGKey(0)
    k_state, k_hidden, k_params = jax.random.split(key, 3)

    decoder_state = jax.random.normal(k_state, (H,), jnp.float32)
    input_hidden_states = jax.random.normal(k_hidden, (L, K), jnp.float32)
    input_sequence = ["show", "flights", "from", "ANON_CITY_0", "to",
                      "ANON_CITY_1", "on", "monday"]
    vocabulary = [f"tok{i}" for i in range(V)]

    params = init_params(k_params, H, K, V)
    # max_tile_v=128 forces several vocab tiles so the streamed grid is exercised
    # even at this small test size (production leaves it None -> VMEM-derived).
    kernel_params = prepare_params(params, H, K, max_tile_v=128)
    anonymizer = SimpleAnonymizer()

    prediction_input = {
        "decoder_state": decoder_state,
        "input_hidden_states": input_hidden_states,
        "input_sequence": input_sequence,
    }

    pred = anonymization_token_predictor_forward(
        prediction_input, kernel_params, vocabulary, anonymizer)

    jax.block_until_ready(pred.scores)
    jax.block_until_ready(pred.utterance_attention_results.vector)

    n_anon = sum(1 for t in input_sequence if anonymizer.is_anon_tok(t))
    assert pred.scores.shape == (V + n_anon,)
    assert len(pred.aligned_tokens) == V + n_anon
    assert pred.utterance_attention_results.scores.shape == (L, 1)
    assert pred.utterance_attention_results.distribution.shape == (L, 1)
    assert pred.utterance_attention_results.vector.shape == (K,)
    assert bool(jnp.all(jnp.isfinite(pred.scores)))

    # Tolerance-based reference check (bf16 is used only for the vocab projection).
    ref_scores, ref_dist, ref_ctx, ref_vocab = _reference_forward(
        decoder_state, input_hidden_states, params)
    got_scores = pred.utterance_attention_results.scores.reshape(-1)
    got_dist = pred.utterance_attention_results.distribution.reshape(-1)
    assert bool(jnp.allclose(got_scores, ref_scores, atol=1e-4, rtol=1e-4))
    assert bool(jnp.allclose(got_dist, ref_dist, atol=1e-5, rtol=1e-4))
    assert abs(float(jnp.sum(got_dist)) - 1.0) < 1e-5
    assert bool(jnp.allclose(pred.utterance_attention_results.vector, ref_ctx,
                             atol=1e-4, rtol=1e-4))
    assert bool(jnp.allclose(pred.scores[:V], ref_vocab, atol=3e-2, rtol=3e-2))
    assert bool(jnp.allclose(pred.scores[V:], ref_scores[jnp.asarray(
        [i for i, t in enumerate(input_sequence) if anonymizer.is_anon_tok(t)])],
        atol=1e-4, rtol=1e-4))

    print("KERNEL_OK")
</pallas_src>

<mosaic_0001>
module attributes {stable_mosaic.version = 11 : i64} {
  func.func @_attention_kernel(%arg0: memref<1x32xf32, #tpu.memory_space<vmem>>, %arg1: memref<8x32xf32, #tpu.memory_space<vmem>>, %arg2: memref<32x32xf32, #tpu.memory_space<vmem>>, %arg3: memref<32x32xf32, #tpu.memory_space<vmem>>, %arg4: memref<32x32xf32, #tpu.memory_space<vmem>>, %arg5: memref<1x8xf32, #tpu.memory_space<vmem>>, %arg6: memref<1x8xf32, #tpu.memory_space<vmem>>, %arg7: memref<1x32xf32, #tpu.memory_space<vmem>>, %arg8: memref<1x32xf32, #tpu.memory_space<vmem>>) attributes {dimension_semantics = [], scalar_prefetch = 0 : i64, scratch_operands = 0 : i64, tpu.core_type = #tpu.core_type<tc>} {
    %c0 = arith.constant 0 : index
    %c0_0 = arith.constant 0 : index
    %0 = vector.load %arg0[%c0, %c0_0] : memref<1x32xf32, #tpu.memory_space<vmem>>, vector<1x32xf32>
    %c0_1 = arith.constant 0 : index
    %c0_2 = arith.constant 0 : index
    %1 = vector.load %arg1[%c0_1, %c0_2] : memref<8x32xf32, #tpu.memory_space<vmem>>, vector<8x32xf32>
    %c0_3 = arith.constant 0 : index
    %c0_4 = arith.constant 0 : index
    %2 = vector.load %arg2[%c0_3, %c0_4] : memref<32x32xf32, #tpu.memory_space<vmem>>, vector<32x32xf32>
    %cst = arith.constant dense<0.000000e+00> : vector<1x32xf32>
    %3 = tpu.matmul %0, %2, %cst {dimension_numbers = #tpu.dot_dimension_numbers<[1], [0], [0], [1], [0, 0, 1, 1], [], []>} : vector<1x32xf32>, vector<32x32xf32>, vector<1x32xf32> -> vector<1x32xf32>
    %cst_5 = arith.constant dense<0.000000e+00> : vector<1x8xf32>
    %4 = tpu.matmul %3, %1, %cst_5 {dimension_numbers = #tpu.dot_dimension_numbers<[1], [1], [0], [0], [0, 0, 1, 0], [], []>} : vector<1x32xf32>, vector<8x32xf32>, vector<1x8xf32> -> vector<1x8xf32>
    %c0_6 = arith.constant 0 : index
    %c0_7 = arith.constant 0 : index
    %5 = vector.load %arg5[%c0_6, %c0_7] : memref<1x8xf32, #tpu.memory_space<vmem>>, vector<1x8xf32>
    tpu.vector_store %arg5[%c0_6, %c0_7], %4 {strides = array<i32>} : memref<1x8xf32, #tpu.memory_space<vmem>>, vector<1x8xf32>,
    %cst_8 = arith.constant dense<0xFF800000> : vector<1xf32>
    %6 = vector.multi_reduction <maximumf>, %4, %cst_8 [1] : vector<1x8xf32> to vector<1xf32>
    %7 = vector.shape_cast %6 : vector<1xf32> to vector<1x1xf32>
    %8 = vector.broadcast %7 : vector<1x1xf32> to vector<1x8xf32>
    %9 = arith.subf %4, %8 : vector<1x8xf32>
    %10 = math.exp %9 : vector<1x8xf32>
    %cst_9 = arith.constant dense<0.000000e+00> : vector<1xf32>
    %11 = vector.multi_reduction <add>, %10, %cst_9 [1] : vector<1x8xf32> to vector<1xf32>
    %12 = vector.shape_cast %11 : vector<1xf32> to vector<1x1xf32>
    %13 = vector.broadcast %12 : vector<1x1xf32> to vector<1x8xf32>
    %14 = arith.divf %10, %13 : vector<1x8xf32>
    %c0_10 = arith.constant 0 : index
    %c0_11 = arith.constant 0 : index
    %15 = vector.load %arg6[%c0_10, %c0_11] : memref<1x8xf32, #tpu.memory_space<vmem>>, vector<1x8xf32>
    tpu.vector_store %arg6[%c0_10, %c0_11], %14 {strides = array<i32>} : memref<1x8xf32, #tpu.memory_space<vmem>>, vector<1x8xf32>,
    %cst_12 = arith.constant dense<0.000000e+00> : vector<1x32xf32>
    %16 = tpu.matmul %14, %1, %cst_12 {dimension_numbers = #tpu.dot_dimension_numbers<[1], [0], [0], [1], [0, 0, 1, 1], [], []>} : vector<1x8xf32>, vector<8x32xf32>, vector<1x32xf32> -> vector<1x32xf32>
    %c0_13 = arith.constant 0 : index
    %c0_14 = arith.constant 0 : index
    %17 = vector.load %arg7[%c0_13, %c0_14] : memref<1x32xf32, #tpu.memory_space<vmem>>, vector<1x32xf32>
    tpu.vector_store %arg7[%c0_13, %c0_14], %16 {strides = array<i32>} : memref<1x32xf32, #tpu.memory_space<vmem>>, vector<1x32xf32>,
    %c0_15 = arith.constant 0 : index
    %c0_16 = arith.constant 0 : index
    %18 = vector.load %arg3[%c0_15, %c0_16] : memref<32x32xf32, #tpu.memory_space<vmem>>, vector<32x32xf32>
    %cst_17 = arith.constant dense<0.000000e+00> : vector<1x32xf32>
    %19 = tpu.matmul %0, %18, %cst_17 {dimension_numbers = #tpu.dot_dimension_numbers<[1], [0], [0], [1], [0, 0, 1, 1], [], []>} : vector<1x32xf32>, vector<32x32xf32>, vector<1x32xf32> -> vector<1x32xf32>
    %c0_18 = arith.constant 0 : index
    %c0_19 = arith.constant 0 : index
    %20 = vector.load %arg4[%c0_18, %c0_19] : memref<32x32xf32, #tpu.memory_space<vmem>>, vector<32x32xf32>
    %cst_20 = arith.constant dense<0.000000e+00> : vector<1x32xf32>
    %21 = tpu.matmul %16, %20, %cst_20 {dimension_numbers = #tpu.dot_dimension_numbers<[1], [0], [0], [1], [0, 0, 1, 1], [], []>} : vector<1x32xf32>, vector<32x32xf32>, vector<1x32xf32> -> vector<1x32xf32>
    %22 = arith.addf %19, %21 : vector<1x32xf32>
    %23 = math.tanh %22 : vector<1x32xf32>
    %c0_21 = arith.constant 0 : index
    %c0_22 = arith.constant 0 : index
    %24 = vector.load %arg8[%c0_21, %c0_22] : memref<1x32xf32, #tpu.memory_space<vmem>>, vector<1x32xf32>
    tpu.vector_store %arg8[%c0_21, %c0_22], %23 {strides = array<i32>} : memref<1x32xf32, #tpu.memory_space<vmem>>, vector<1x32xf32>,
    return
  }
}

</mosaic_0001>

<llo_original>
// kernel: tpu_custom_call.1
$region0: #{tpu_custom_call.1}
  #allocation0 [shape = 'u32[]', space=smem, size = 0x4, offset = 0x4, fixed_abs, tag = 'smem constant byte address 0x4 - core index']
  #allocation1 [shape = 'u32[144,128]{1,0:T(1,128)}', space=vmem, size = 0x12000, scoped, tag = 'internal scratch']
  %s0 = inlined_call_operand.hbm [shape: f32[1,32], index: 0, kind: input, shape index: {}]
  %s1 = inlined_call_operand.hbm [shape: f32[8,32], index: 1, kind: input, shape index: {}]
  %s2 = inlined_call_operand.hbm [shape: f32[32,32], index: 2, kind: input, shape index: {}]
  %s3 = inlined_call_operand.hbm [shape: f32[32,32], index: 3, kind: input, shape index: {}]
  %s4 = inlined_call_operand.hbm [shape: f32[32,32], index: 4, kind: input, shape index: {}]
  %s5 = inlined_call_operand.hbm [shape: f32[1,8], index: 5, kind: output, shape index: {0}]
  %s6 = inlined_call_operand.hbm [shape: f32[1,8], index: 6, kind: output, shape index: {1}]
  %s7 = inlined_call_operand.hbm [shape: f32[1,32], index: 7, kind: output, shape index: {2}]
  %s8 = inlined_call_operand.hbm [shape: f32[1,32], index: 8, kind: output, shape index: {3}]
  %9 = xla_tuple %s5, %s6, %s7, %s8
  %s10 = sld [smem:[#allocation0]]
  $region74: #{tpu_custom_call.1} parent=0
    _
  %s12 = ssub.s32 1, %s10
  %s13 = scalar_select 0, %s12, %s10
  $region1: #{tpu_custom_call.1} parent=0
    #allocation2 [shape = 'u8[512]{0}', space=vmem, size = 0x400, scoped, tag = 'input window, operand 0, single buffered']
    #allocation3 [shape = 's32[1]{0}', space=sflag, size = 0x4, scoped, tag = 'scoped memory for tpu_custom_call.1']
    #allocation4 [shape = 's32[1]{0}', space=sflag, size = 0x4, scoped, tag = 'scoped memory for tpu_custom_call.1']
    #allocation5 [shape = 'u8[4096]{0}', space=vmem, size = 0x1000, scoped, tag = 'input window, operand 1, single buffered']
    #allocation6 [shape = 's32[1]{0}', space=sflag, size = 0x4, scoped, tag = 'scoped memory for tpu_custom_call.1']
    #allocation7 [shape = 'u8[16384]{0}', space=vmem, size = 0x4000, scoped, tag = 'input window, operand 2, single buffered']
    #allocation8 [shape = 'u8[16384]{0}', space=vmem, size = 0x4000, scoped, tag = 'input window, operand 3, single buffered']
    #allocation9 [shape = 's32[1]{0}', space=sflag, size = 0x4, scoped, tag = 'scoped memory for tpu_custom_call.1']
    #allocation10 [shape = 'u8[16384]{0}', space=vmem, size = 0x4000, scoped, tag = 'input window, operand 4, single buffered']
    #allocation11 [shape = 'u8[512]{0}', space=vmem, size = 0x400, scoped, tag = 'output window, operand 0, single buffered']
    #allocation12 [shape = 'u8[512]{0}', space=vmem, size = 0x400, scoped, tag = 'output window, operand 1, single buffered']
    #allocation13 [shape = 's32[1]{0}', space=sflag, size = 0x4, scoped, tag = 'scoped memory for tpu_custom_call.1']
    #allocation14 [shape = 'u8[512]{0}', space=vmem, size = 0x400, scoped, tag = 'output window, operand 2, single buffered']
    #allocation15 [shape = 'u8[512]{0}', space=vmem, size = 0x400, scoped, tag = 'output window, operand 3, single buffered']
    #allocation16 [shape = 's32[1]{0}', space=sflag, size = 0x4, scoped, tag = 'scoped memory for tpu_custom_call.1']
    %14 = vsyncpa [#allocation3], 0
    %15 = vsyncpa [#allocation6], 0
    %16 = vsyncpa [#allocation9], 0
    %17 = vsyncpa [#allocation4], 0
    %18 = vsyncpa [#allocation13], 0
    %19 = vsyncpa [#allocation16], 0
    // Predicated region
    $region2: #{tpu_custom_call.1} parent=1 // pred_check
      _
    $region3: #{tpu_custom_call.1} parent=1 // pred_check_branch
      %21 = sbr.rel (0) target = $region5
    $region4: #{tpu_custom_call.1} parent=1 // pred_region
      %s23 = ssub.s32 16, 16
      %24 = vsyncadd [#allocation3], %s23
      %s26 = sshll.u32 [#allocation2], 4
      %s27 = int_to_ptr.vmem [resolvable:$true] %s26
      %29 = dma.hbm_to_vmem [thread:$0]  %s0, 16, %s27, [#allocation3]
    $region5: #{tpu_custom_call.1} parent=1 // pred_fallthru
      _
    // Predicated region
    $region6: #{tpu_custom_call.1} parent=1 // pred_check
      _
    $region7: #{tpu_custom_call.1} parent=1 // pred_check_branch
      %31 = sbr.rel (0) target = $region9
    $region8: #{tpu_custom_call.1} parent=1 // pred_region
      %s33 = ssub.s32 128, 128
      %34 = vsyncadd [#allocation6], %s33
      %s36 = sshll.u32 [#allocation5], 4
      %s37 = int_to_ptr.vmem [resolvable:$true] %s36
      %39 = dma.hbm_to_vmem [thread:$0]  %s1, 128, %s37, [#allocation6]
    $region9: #{tpu_custom_call.1} parent=1 // pred_fallthru
      _
    // Predicated region
    $region10: #{tpu_custom_call.1} parent=1 // pred_check
      _
    $region11: #{tpu_custom_call.1} parent=1 // pred_check_branch
      %41 = sbr.rel (0) target = $region13
    $region12: #{tpu_custom_call.1} parent=1 // pred_region
      %s43 = ssub.s32 512, 512
      %44 = vsyncadd [#allocation6], %s43
      %s45 = sshll.u32 [#allocation7], 4
      %s46 = int_to_ptr.vmem [resolvable:$true] %s45
      %51 = dma.hbm_to_vmem [thread:$0]  %s2, 512, %s46, [#allocation6], 128, 128, 8
    $region13: #{tpu_custom_call.1} parent=1 // pred_fallthru
      _
    // Predicated region
    $region14: #{tpu_custom_call.1} parent=1 // pred_check
      _
    $region15: #{tpu_custom_call.1} parent=1 // pred_check_branch
      %53 = sbr.rel (0) target = $region17
    $region16: #{tpu_custom_call.1} parent=1 // pred_region
      %s55 = ssub.s32 512, 512
      %56 = vsyncadd [#allocation9], %s55
      %s57 = sshll.u32 [#allocation8], 4
      %s58 = int_to_ptr.vmem [resolvable:$true] %s57
      %63 = dma.hbm_to_vmem [thread:$0]  %s3, 512, %s58, [#allocation9], 128, 128, 8
    $region17: #{tpu_custom_call.1} parent=1 // pred_fallthru
      _
    // Predicated region
    $region18: #{tpu_custom_call.1} parent=1 // pred_check
      _
    $region19: #{tpu_custom_call.1} parent=1 // pred_check_branch
      %65 = sbr.rel (0) target = $region21
    $region20: #{tpu_custom_call.1} parent=1 // pred_region
      %s67 = ssub.s32 512, 512
      %68 = vsyncadd [#allocation9], %s67
      %s69 = sshll.u32 [#allocation10], 4
      %s70 = int_to_ptr.vmem [resolvable:$true] %s69
      %75 = dma.hbm_to_vmem [thread:$0]  %s4, 512, %s70, [#allocation9], 128, 128, 8
    $region21: #{tpu_custom_call.1} parent=1 // pred_fallthru
      _
    // Predicated region
    $region22: #{tpu_custom_call.1} parent=1 // pred_check
      _
    $region23: #{tpu_custom_call.1} parent=1 // pred_check_branch
      %77 = sbr.rel (0) target = $region25
    $region24: #{tpu_custom_call.1} parent=1 // pred_region
      %78 = dma.done [#allocation3], 16
    $region25: #{tpu_custom_call.1} parent=1 // pred_fallthru
      _
    // Predicated region
    $region26: #{tpu_custom_call.1} parent=1 // pred_check
      _
    $region27: #{tpu_custom_call.1} parent=1 // pred_check_branch
      %80 = sbr.rel (0) target = $region29
    $region28: #{tpu_custom_call.1} parent=1 // pred_region
      %81 = dma.done [#allocation6], 128
    $region29: #{tpu_custom_call.1} parent=1 // pred_fallthru
      _
    // Predicated region
    $region30: #{tpu_custom_call.1} parent=1 // pred_check
      _
    $region31: #{tpu_custom_call.1} parent=1 // pred_check_branch
      %83 = sbr.rel (0) target = $region33
    $region32: #{tpu_custom_call.1} parent=1 // pred_region
      %84 = dma.done [#allocation6], 512
    $region33: #{tpu_custom_call.1} parent=1 // pred_fallthru
      _
    // Predicated region
    $region34: #{tpu_custom_call.1} parent=1 // pred_check
      _
    $region35: #{tpu_custom_call.1} parent=1 // pred_check_branch
      %86 = sbr.rel (0) target = $region37
    $region36: #{tpu_custom_call.1} parent=1 // pred_region
      %87 = dma.done [#allocation9], 512
    $region37: #{tpu_custom_call.1} parent=1 // pred_fallthru
      _
    // Predicated region
    $region38: #{tpu_custom_call.1} parent=1 // pred_check
      _
    $region39: #{tpu_custom_call.1} parent=1 // pred_check_branch
      %89 = sbr.rel (0) target = $region41
    $region40: #{tpu_custom_call.1} parent=1 // pred_region
      %90 = dma.done [#allocation9], 512
    $region41: #{tpu_custom_call.1} parent=1 // pred_fallthru
      _
    %v91 = vld [vmem:[#allocation2] sm:$0x1]
    %v92 = vld [vmem:[#allocation5] sm:$0xff]
    %v93 = vld [vmem:[#allocation7] sm:$0xff]
    %v94 = vld [vmem:[#allocation7 + $0x8] sm:$0xff]
    %v95 = vld [vmem:[#allocation7 + $0x10] sm:$0xff]
    %v96 = vld [vmem:[#allocation7 + $0x18] sm:$0xff]
    %vm97 = vcmask 261120
    %v99 = vsel %vm97, %v91, 0
    %101 = vmatprep.subr.mxu0 0.0
    %102 = vmatpush1.msra.mxu0 %v93
    %103 = vmatprep.subr.mxu0 0.0
    %104 = vmatpush1.msra.mxu0 %v94
    %105 = vmatprep.subr.mxu0 0.0
    %106 = vmatpush1.msra.mxu0 %v95
    %107 = vmatprep.subr.mxu0 0.0
    %108 = vmatpush1.msra.mxu0 %v96
    %109 = vmatprep.subr.mxu0 0.0
    %110 = vmatpush1.msra.mxu0 0.0
    %111 = vmatprep.subr.mxu0 0.0
    %112 = vmatpush1.msra.mxu0 0.0
    %113 = vmatprep.subr.mxu0 0.0
    %114 = vmatpush1.msra.mxu0 0.0
    %115 = vmatprep.subr.mxu0 0.0
    %116 = vmatpush1.msra.mxu0 0.0
    %117 = vmatprep.subr.mxu0 0.0
    %118 = vmatpush1.msra.mxu0 0.0
    %119 = vmatprep.subr.mxu0 0.0
    %120 = vmatpush1.msra.mxu0 0.0
    %121 = vmatprep.subr.mxu0 0.0
    %122 = vmatpush1.msra.mxu0 0.0
    %123 = vmatprep.subr.mxu0 0.0
    %124 = vmatpush1.msra.mxu0 0.0
    %125 = vmatprep.subr.mxu0 0.0
    %126 = vmatpush1.msra.mxu0 0.0
    %127 = vmatprep.subr.mxu0 0.0
    %128 = vmatpush1.msra.mxu0 0.0
    %129 = vmatprep.subr.mxu0 0.0
    %130 = vmatpush1.msra.mxu0 0.0
    %131 = vmatprep.subr.mxu0 0.0
    %132 = vmatpush1.msra.mxu0 0.0
    %133 = vmatprep.subr.mxu0 0.0
    %134 = vmatpush1.msra.mxu0 0.0
    %135 = vmatprep.subr.mxu0 0.0
    %136 = vmatpush1.msra.mxu0 0.0
    %137 = vmatprep.subr.mxu0 0.0
    %138 = vmatpush1.msra.mxu0 0.0
    %139 = vmatprep.subr.mxu0 0.0
    %140 = vmatpush1.msra.mxu0 0.0
    %141 = vmatprep.subr.mxu0 0.0
    %142 = vmatpush1.msra.mxu0 0.0
    %143 = vmatprep.subr.mxu0 0.0
    %144 = vmatpush1.msra.mxu0 0.0
    %145 = vmatprep.subr.mxu0 0.0
    %146 = vmatpush1.msra.mxu0 0.0
    %147 = vmatprep.subr.mxu0 0.0
    %148 = vmatpush1.msra.mxu0 0.0
    %149 = vmatprep.subr.mxu0 0.0
    %150 = vmatpush1.msra.mxu0 0.0
    %151 = vmatprep.subr.mxu0 0.0
    %152 = vmatpush1.msra.mxu0 0.0
    %153 = vmatprep.subr.mxu0 0.0
    %154 = vmatpush1.msra.mxu0 0.0
    %155 = vmatprep.subr.mxu0 0.0
    %156 = vmatpush1.msra.mxu0 0.0
    %157 = vmatprep.subr.mxu0 0.0
    %158 = vmatpush1.msra.mxu0 0.0
    %159 = vmatprep.subr.mxu0 0.0
    %160 = vmatpush1.msra.mxu0 0.0
    %161 = vmatprep.subr.mxu0 0.0
    %162 = vmatpush1.msra.mxu0 0.0
    %163 = vmatprep.subr.mxu0 0.0
    %164 = vmatpush1.msra.mxu0 0.0
    %165 = vmatprep.mubr.f32.mxu0 0.0
    %166 = vmatmul.mubr.f32.gmra.mrb[0].mxu0 %v99
    %v167 = vpop.f32.mrb[0].mxu0
    %v168 = vadd.f32 0.0, %v167
    %v169 = vpop.f32.mrb[0].mxu0
    %170 = vdwg.mxu0
    %v172 = vsel %vm97, %v168, 0
    %v175 = vsel %vm97, %v92, 0
    %177 = vmatprep.subr.mxu0 0.0
    %178 = vmatpush1.xpose.msra.mxu0 %v175
    %179 = vmatprep.subr.mxu0 0.0
    %180 = vmatpush1.xpose.msra.mxu0 0.0
    %181 = vmatprep.subr.mxu0 0.0
    %182 = vmatpush1.xpose.msra.mxu0 0.0
    %183 = vmatprep.subr.mxu0 0.0
    %184 = vmatpush1.xpose.msra.mxu0 0.0
    %185 = vmatprep.subr.mxu0 0.0
    %186 = vmatpush1.xpose.msra.mxu0 0.0
    %187 = vmatprep.subr.mxu0 0.0
    %188 = vmatpush1.xpose.msra.mxu0 0.0
    %189 = vmatprep.subr.mxu0 0.0
    %190 = vmatpush1.xpose.msra.mxu0 0.0
    %191 = vmatprep.subr.mxu0 0.0
    %192 = vmatpush1.xpose.msra.mxu0 0.0
    %193 = vmatprep.subr.mxu0 0.0
    %194 = vmatpush1.xpose.msra.mxu0 0.0
    %195 = vmatprep.subr.mxu0 0.0
    %196 = vmatpush1.xpose.msra.mxu0 0.0
    %197 = vmatprep.subr.mxu0 0.0
    %198 = vmatpush1.xpose.msra.mxu0 0.0
    %199 = vmatprep.subr.mxu0 0.0
    %200 = vmatpush1.xpose.msra.mxu0 0.0
    %201 = vmatprep.subr.mxu0 0.0
    %202 = vmatpush1.xpose.msra.mxu0 0.0
    %203 = vmatprep.subr.mxu0 0.0
    %204 = vmatpush1.xpose.msra.mxu0 0.0
    %205 = vmatprep.subr.mxu0 0.0
    %206 = vmatpush1.xpose.msra.mxu0 0.0
    %207 = vmatprep.subr.mxu0 0.0
    %208 = vmatpush1.xpose.msra.mxu0 0.0
    %209 = vmatprep.subr.mxu0 0.0
    %210 = vmatpush1.xpose.msra.mxu0 0.0
    %211 = vmatprep.subr.mxu0 0.0
    %212 = vmatpush1.xpose.msra.mxu0 0.0
    %213 = vmatprep.subr.mxu0 0.0
    %214 = vmatpush1.xpose.msra.mxu0 0.0
    %215 = vmatprep.subr.mxu0 0.0
    %216 = vmatpush1.xpose.msra.mxu0 0.0
    %217 = vmatprep.subr.mxu0 0.0
    %218 = vmatpush1.xpose.msra.mxu0 0.0
    %219 = vmatprep.subr.mxu0 0.0
    %220 = vmatpush1.xpose.msra.mxu0 0.0
    %221 = vmatprep.subr.mxu0 0.0
    %222 = vmatpush1.xpose.msra.mxu0 0.0
    %223 = vmatprep.subr.mxu0 0.0
    %224 = vmatpush1.xpose.msra.mxu0 0.0
    %225 = vmatprep.subr.mxu0 0.0
    %226 = vmatpush1.xpose.msra.mxu0 0.0
    %227 = vmatprep.subr.mxu0 0.0
    %228 = vmatpush1.xpose.msra.mxu0 0.0
    %229 = vmatprep.subr.mxu0 0.0
    %230 = vmatpush1.xpose.msra.mxu0 0.0
    %231 = vmatprep.subr.mxu0 0.0
    %232 = vmatpush1.xpose.msra.mxu0 0.0
    %233 = vmatprep.subr.mxu0 0.0
    %234 = vmatpush1.xpose.msra.mxu0 0.0
    %235 = vmatprep.subr.mxu0 0.0
    %236 = vmatpush1.xpose.msra.mxu0 0.0
    %237 = vmatprep.subr.mxu0 0.0
    %238 = vmatpush1.xpose.msra.mxu0 0.0
    %239 = vmatprep.subr.mxu0 0.0
    %240 = vmatpush1.xpose.msra.mxu0 0.0
    %241 = vmatprep.mubr.f32.mxu0 0.0
    %242 = vmatmul.mubr.f32.gmra.mrb[0].mxu0 %v172
    %v243 = vpop.f32.mrb[0].mxu0
    %v244 = vadd.f32 0.0, %v243
    %v245 = vpop.f32.mrb[0].mxu0
    %246 = vdwg.mxu0
    %vm247 = vcmask 57344
    %248 = vst.msk [vmem:[#allocation11] sm:$0x1] %vm247, %v244
    %v249 = vsel %vm247, %v244, -inf
    %250 = vmax.xlane.f32.xlu0 %v249
    %v251 = vpop.xlane.xlu0 %250
    %v252 = vsub.f32 %v244, %v251
    %v253 = vmul.f32 %v252, 1.442695
    %v254 = vpow.pop %v253
    %v255 = vsel %vm247, %v254, 0.0
    %256 = vadd.xlane.f32.xlu0 %v255
    %v257 = vpop.xlane.xlu0 %256
    %v258 = vrcp.pop %v257
    %v259 = vmul.f32 %v254, %v258
    %260 = vst.msk [vmem:[#allocation12] sm:$0x1] %vm247, %v259
    %vm261 = vcmask 64512
    %v263 = vsel %vm261, %v259, 0
    %265 = vmatprep.subr.mxu0 0.0
    %266 = vmatpush1.msra.mxu0 %v92
    %267 = vmatprep.subr.mxu0 0.0
    %268 = vmatpush1.msra.mxu0 0.0
    %269 = vmatprep.subr.mxu0 0.0
    %270 = vmatpush1.msra.mxu0 0.0
    %271 = vmatprep.subr.mxu0 0.0
    %272 = vmatpush1.msra.mxu0 0.0
    %273 = vmatprep.subr.mxu0 0.0
    %274 = vmatpush1.msra.mxu0 0.0
    %275 = vmatprep.subr.mxu0 0.0
    %276 = vmatpush1.msra.mxu0 0.0
    %277 = vmatprep.subr.mxu0 0.0
    %278 = vmatpush1.msra.mxu0 0.0
    %279 = vmatprep.subr.mxu0 0.0
    %280 = vmatpush1.msra.mxu0 0.0
    %281 = vmatprep.subr.mxu0 0.0
    %282 = vmatpush1.msra.mxu0 0.0
    %283 = vmatprep.subr.mxu0 0.0
    %284 = vmatpush1.msra.mxu0 0.0
    %285 = vmatprep.subr.mxu0 0.0
    %286 = vmatpush1.msra.mxu0 0.0
    %287 = vmatprep.subr.mxu0 0.0
    %288 = vmatpush1.msra.mxu0 0.0
    %289 = vmatprep.subr.mxu0 0.0
    %290 = vmatpush1.msra.mxu0 0.0
    %291 = vmatprep.subr.mxu0 0.0
    %292 = vmatpush1.msra.mxu0 0.0
    %293 = vmatprep.subr.mxu0 0.0
    %294 = vmatpush1.msra.mxu0 0.0
    %295 = vmatprep.subr.mxu0 0.0
    %296 = vmatpush1.msra.mxu0 0.0
    %297 = vmatprep.subr.mxu0 0.0
    %298 = vmatpush1.msra.mxu0 0.0
    %299 = vmatprep.subr.mxu0 0.0
    %300 = vmatpush1.msra.mxu0 0.0
    %301 = vmatprep.subr.mxu0 0.0
    %302 = vmatpush1.msra.mxu0 0.0
    %303 = vmatprep.subr.mxu0 0.0
    %304 = vmatpush1.msra.mxu0 0.0
    %305 = vmatprep.subr.mxu0 0.0
    %306 = vmatpush1.msra.mxu0 0.0
    %307 = vmatprep.subr.mxu0 0.0
    %308 = vmatpush1.msra.mxu0 0.0
    %309 = vmatprep.subr.mxu0 0.0
    %310 = vmatpush1.msra.mxu0 0.0
    %311 = vmatprep.subr.mxu0 0.0
    %312 = vmatpush1.msra.mxu0 0.0
    %313 = vmatprep.subr.mxu0 0.0
    %314 = vmatpush1.msra.mxu0 0.0
    %315 = vmatprep.subr.mxu0 0.0
    %316 = vmatpush1.msra.mxu0 0.0
    %317 = vmatprep.subr.mxu0 0.0
    %318 = vmatpush1.msra.mxu0 0.0
    %319 = vmatprep.subr.mxu0 0.0
    %320 = vmatpush1.msra.mxu0 0.0
    %321 = vmatprep.subr.mxu0 0.0
    %322 = vmatpush1.msra.mxu0 0.0
    %323 = vmatprep.subr.mxu0 0.0
    %324 = vmatpush1.msra.mxu0 0.0
    %325 = vmatprep.subr.mxu0 0.0
    %326 = vmatpush1.msra.mxu0 0.0
    %327 = vmatprep.subr.mxu0 0.0
    %328 = vmatpush1.msra.mxu0 0.0
    %329 = vmatprep.mubr.f32.mxu0 0.0
    %330 = vmatmul.mubr.f32.gmra.mrb[0].mxu0 %v263
    %v331 = vpop.f32.mrb[0].mxu0
    %v332 = vadd.f32 0.0, %v331
    %v333 = vpop.f32.mrb[0].mxu0
    %334 = vdwg.mxu0
    %vm335 = vcmask 253952
    %336 = vst.msk [vmem:[#allocation14] sm:$0x1] %vm335, %v332
    %v337 = vld [vmem:[#allocation8] sm:$0xff]
    %v338 = vld [vmem:[#allocation8 + $0x8] sm:$0xff]
    %v339 = vld [vmem:[#allocation8 + $0x10] sm:$0xff]
    %v340 = vld [vmem:[#allocation8 + $0x18] sm:$0xff]
    %v341 = vld [vmem:[#allocation10] sm:$0xff]
    %v342 = vld [vmem:[#allocation10 + $0x8] sm:$0xff]
    %v343 = vld [vmem:[#allocation10 + $0x10] sm:$0xff]
    %v344 = vld [vmem:[#allocation10 + $0x18] sm:$0xff]
    %v346 = vsel %vm97, %v332, 0
    %348 = vmatprep.subr.mxu0 0.0
    %349 = vmatpush1.msra.mxu0 %v341
    %350 = vmatprep.subr.mxu0 0.0
    %351 = vmatpush1.msra.mxu0 %v342
    %352 = vmatprep.subr.mxu0 0.0
    %353 = vmatpush1.msra.mxu0 %v343
    %354 = vmatprep.subr.mxu0 0.0
    %355 = vmatpush1.msra.mxu0 %v344
    %356 = vmatprep.subr.mxu0 0.0
    %357 = vmatpush1.msra.mxu0 0.0
    %358 = vmatprep.subr.mxu0 0.0
    %359 = vmatpush1.msra.mxu0 0.0
    %360 = vmatprep.subr.mxu0 0.0
    %361 = vmatpush1.msra.mxu0 0.0
    %362 = vmatprep.subr.mxu0 0.0
    %363 = vmatpush1.msra.mxu0 0.0
    %364 = vmatprep.subr.mxu0 0.0
    %365 = vmatpush1.msra.mxu0 0.0
    %366 = vmatprep.subr.mxu0 0.0
    %367 = vmatpush1.msra.mxu0 0.0
    %368 = vmatprep.subr.mxu0 0.0
    %369 = vmatpush1.msra.mxu0 0.0
    %370 = vmatprep.subr.mxu0 0.0
    %371 = vmatpush1.msra.mxu0 0.0
    %372 = vmatprep.subr.mxu0 0.0
    %373 = vmatpush1.msra.mxu0 0.0
    %374 = vmatprep.subr.mxu0 0.0
    %375 = vmatpush1.msra.mxu0 0.0
    %376 = vmatprep.subr.mxu0 0.0
    %377 = vmatpush1.msra.mxu0 0.0
    %378 = vmatprep.subr.mxu0 0.0
    %379 = vmatpush1.msra.mxu0 0.0
    %380 = vmatprep.subr.mxu0 0.0
    %381 = vmatpush1.msra.mxu0 0.0
    %382 = vmatprep.subr.mxu0 0.0
    %383 = vmatpush1.msra.mxu0 0.0
    %384 = vmatprep.subr.mxu0 0.0
    %385 = vmatpush1.msra.mxu0 0.0
    %386 = vmatprep.subr.mxu0 0.0
    %387 = vmatpush1.msra.mxu0 0.0
    %388 = vmatprep.subr.mxu0 0.0
    %389 = vmatpush1.msra.mxu0 0.0
    %390 = vmatprep.subr.mxu0 0.0
    %391 = vmatpush1.msra.mxu0 0.0
    %392 = vmatprep.subr.mxu0 0.0
    %393 = vmatpush1.msra.mxu0 0.0
    %394 = vmatprep.subr.mxu0 0.0
    %395 = vmatpush1.msra.mxu0 0.0
    %396 = vmatprep.subr.mxu0 0.0
    %397 = vmatpush1.msra.mxu0 0.0
    %398 = vmatprep.subr.mxu0 0.0
    %399 = vmatpush1.msra.mxu0 0.0
    %400 = vmatprep.subr.mxu0 0.0
    %401 = vmatpush1.msra.mxu0 0.0
    %402 = vmatprep.subr.mxu0 0.0
    %403 = vmatpush1.msra.mxu0 0.0
    %404 = vmatprep.subr.mxu0 0.0
    %405 = vmatpush1.msra.mxu0 0.0
    %406 = vmatprep.subr.mxu0 0.0
    %407 = vmatpush1.msra.mxu0 0.0
    %408 = vmatprep.subr.mxu0 0.0
    %409 = vmatpush1.msra.mxu0 0.0
    %410 = vmatprep.subr.mxu0 0.0
    %411 = vmatpush1.msra.mxu0 0.0
    %412 = vmatprep.mubr.f32.mxu0 0.0
    %413 = vmatmul.mubr.f32.gmra.mrb[0].mxu0 %v346
    %v414 = vpop.f32.mrb[0].mxu0
    %v415 = vadd.f32 0.0, %v414
    %v416 = vpop.f32.mrb[0].mxu0
    %417 = vdwg.mxu0
    %418 = vmatprep.subr.mxu0 0.0
    %419 = vmatpush1.msra.mxu0 %v337
    %420 = vmatprep.subr.mxu0 0.0
    %421 = vmatpush1.msra.mxu0 %v338
    %422 = vmatprep.subr.mxu0 0.0
    %423 = vmatpush1.msra.mxu0 %v339
    %424 = vmatprep.subr.mxu0 0.0
    %425 = vmatpush1.msra.mxu0 %v340
    %426 = vmatprep.subr.mxu0 0.0
    %427 = vmatpush1.msra.mxu0 0.0
    %428 = vmatprep.subr.mxu0 0.0
    %429 = vmatpush1.msra.mxu0 0.0
    %430 = vmatprep.subr.mxu0 0.0
    %431 = vmatpush1.msra.mxu0 0.0
    %432 = vmatprep.subr.mxu0 0.0
    %433 = vmatpush1.msra.mxu0 0.0
    %434 = vmatprep.subr.mxu0 0.0
    %435 = vmatpush1.msra.mxu0 0.0
    %436 = vmatprep.subr.mxu0 0.0
    %437 = vmatpush1.msra.mxu0 0.0
    %438 = vmatprep.subr.mxu0 0.0
    %439 = vmatpush1.msra.mxu0 0.0
    %440 = vmatprep.subr.mxu0 0.0
    %441 = vmatpush1.msra.mxu0 0.0
    %442 = vmatprep.subr.mxu0 0.0
    %443 = vmatpush1.msra.mxu0 0.0
    %444 = vmatprep.subr.mxu0 0.0
    %445 = vmatpush1.msra.mxu0 0.0
    %446 = vmatprep.subr.mxu0 0.0
    %447 = vmatpush1.msra.mxu0 0.0
    %448 = vmatprep.subr.mxu0 0.0
    %449 = vmatpush1.msra.mxu0 0.0
    %450 = vmatprep.subr.mxu0 0.0
    %451 = vmatpush1.msra.mxu0 0.0
    %452 = vmatprep.subr.mxu0 0.0
    %453 = vmatpush1.msra.mxu0 0.0
    %454 = vmatprep.subr.mxu0 0.0
    %455 = vmatpush1.msra.mxu0 0.0
    %456 = vmatprep.subr.mxu0 0.0
    %457 = vmatpush1.msra.mxu0 0.0
    %458 = vmatprep.subr.mxu0 0.0
    %459 = vmatpush1.msra.mxu0 0.0
    %460 = vmatprep.subr.mxu0 0.0
    %461 = vmatpush1.msra.mxu0 0.0
    %462 = vmatprep.subr.mxu0 0.0
    %463 = vmatpush1.msra.mxu0 0.0
    %464 = vmatprep.subr.mxu0 0.0
    %465 = vmatpush1.msra.mxu0 0.0
    %466 = vmatprep.subr.mxu0 0.0
    %467 = vmatpush1.msra.mxu0 0.0
    %468 = vmatprep.subr.mxu0 0.0
    %469 = vmatpush1.msra.mxu0 0.0
    %470 = vmatprep.subr.mxu0 0.0
    %471 = vmatpush1.msra.mxu0 0.0
    %472 = vmatprep.subr.mxu0 0.0
    %473 = vmatpush1.msra.mxu0 0.0
    %474 = vmatprep.subr.mxu0 0.0
    %475 = vmatpush1.msra.mxu0 0.0
    %476 = vmatprep.subr.mxu0 0.0
    %477 = vmatpush1.msra.mxu0 0.0
    %478 = vmatprep.subr.mxu0 0.0
    %479 = vmatpush1.msra.mxu0 0.0
    %480 = vmatprep.subr.mxu0 0.0
    %481 = vmatpush1.msra.mxu0 0.0
    %482 = vmatprep.mubr.f32.mxu0 0.0
    %483 = vmatmul.mubr.f32.gmra.mrb[0].mxu0 %v99
    %v484 = vpop.f32.mrb[0].mxu0
    %v485 = vadd.f32 %v415, %v484
    %v486 = vpop.f32.mrb[0].mxu0
    %487 = vdwg.mxu0
    %v488 = vtanh.pop %v485
    %489 = vst.msk [vmem:[#allocation15] sm:$0x1] %vm335, %v488
    // Predicated region
    $region42: #{tpu_custom_call.1} parent=1 // pred_check
      _
    $region43: #{tpu_custom_call.1} parent=1 // pred_check_branch
      %491 = sbr.rel (0) target = $region45
    $region44: #{tpu_custom_call.1} parent=1 // pred_region
      %s493 = ssub.s32 16, 16
      %494 = vsyncadd [#allocation4], %s493
      %s496 = sshll.u32 [#allocation11], 4
      %s497 = int_to_ptr.vmem [resolvable:$true] %s496
      %499 = dma.vmem_to_hbm [thread:$0]  %s497, 16, %s5, [#allocation4]
    $region45: #{tpu_custom_call.1} parent=1 // pred_fallthru
      _
    // Predicated region
    $region46: #{tpu_custom_call.1} parent=1 // pred_check
      _
    $region47: #{tpu_custom_call.1} parent=1 // pred_check_branch
      %501 = sbr.rel (0) target = $region49
    $region48: #{tpu_custom_call.1} parent=1 // pred_region
      %s503 = ssub.s32 16, 16
      %504 = vsyncadd [#allocation13], %s503
      %s506 = sshll.u32 [#allocation12], 4
      %s507 = int_to_ptr.vmem [resolvable:$true] %s506
      %509 = dma.vmem_to_hbm [thread:$0]  %s507, 16, %s6, [#allocation13]
    $region49: #{tpu_custom_call.1} parent=1 // pred_fallthru
      _
    // Predicated region
    $region50: #{tpu_custom_call.1} parent=1 // pred_check
      _
    $region51: #{tpu_custom_call.1} parent=1 // pred_check_branch
      %511 = sbr.rel (0) target = $region53
    $region52: #{tpu_custom_call.1} parent=1 // pred_region
      %s513 = ssub.s32 16, 16
      %514 = vsyncadd [#allocation13], %s513
      %s516 = sshll.u32 [#allocation14], 4
      %s517 = int_to_ptr.vmem [resolvable:$true] %s516
      %519 = dma.vmem_to_hbm [thread:$0]  %s517, 16, %s7, [#allocation13]
    $region53: #{tpu_custom_call.1} parent=1 // pred_fallthru
      _
    // Predicated region
    $region54: #{tpu_custom_call.1} parent=1 // pred_check
      _
    $region55: #{tpu_custom_call.1} parent=1 // pred_check_branch
      %521 = sbr.rel (0) target = $region57
    $region56: #{tpu_custom_call.1} parent=1 // pred_region
      %s523 = ssub.s32 16, 16
      %524 = vsyncadd [#allocation16], %s523
      %s526 = sshll.u32 [#allocation15], 4
      %s527 = int_to_ptr.vmem [resolvable:$true] %s526
      %529 = dma.vmem_to_hbm [thread:$0]  %s527, 16, %s8, [#allocation16]
    $region57: #{tpu_custom_call.1} parent=1 // pred_fallthru
      _
    // Predicated region
    $region58: #{tpu_custom_call.1} parent=1 // pred_check
      _
    $region59: #{tpu_custom_call.1} parent=1 // pred_check_branch
      %531 = sbr.rel (0) target = $region61
    $region60: #{tpu_custom_call.1} parent=1 // pred_region
      %532 = dma.done [#allocation4], 16
    $region61: #{tpu_custom_call.1} parent=1 // pred_fallthru
      _
    // Predicated region
    $region62: #{tpu_custom_call.1} parent=1 // pred_check
      _
    $region63: #{tpu_custom_call.1} parent=1 // pred_check_branch
      %534 = sbr.rel (0) target = $region65
    $region64: #{tpu_custom_call.1} parent=1 // pred_region
      %535 = dma.done [#allocation13], 16
    $region65: #{tpu_custom_call.1} parent=1 // pred_fallthru
      _
    // Predicated region
    $region66: #{tpu_custom_call.1} parent=1 // pred_check
      _
    $region67: #{tpu_custom_call.1} parent=1 // pred_check_branch
      %537 = sbr.rel (0) target = $region69
    $region68: #{tpu_custom_call.1} parent=1 // pred_region
      %538 = dma.done [#allocation13], 16
    $region69: #{tpu_custom_call.1} parent=1 // pred_fallthru
      _
    // Predicated region
    $region70: #{tpu_custom_call.1} parent=1 // pred_check
      _
    $region71: #{tpu_custom_call.1} parent=1 // pred_check_branch
      %540 = sbr.rel (0) target = $region73
    $region72: #{tpu_custom_call.1} parent=1 // pred_region
      %541 = dma.done [#allocation16], 16
    $region73: #{tpu_custom_call.1} parent=1 // pred_fallthru
      _
    %542 = vsyncpa [#allocation3], 1
    %543 = vsyncpa [#allocation6], 1
    %544 = vsyncpa [#allocation9], 1
    %545 = vsyncpa [#allocation4], 1
    %546 = vsyncpa [#allocation13], 1
    %547 = vsyncpa [#allocation16], 1

</llo_original>
